<compile_context>
chip_gen: v6e
topology: v6e:2x2x1
jax: 0.10.0
libtpu: 0.0.40
codegen_flags: <defaults>
</compile_context>

<pallas_src>
import functools

import jax
import jax.numpy as jnp
from jax import lax
from jax.experimental import pallas as pl
from jax.experimental.pallas import tpu as pltpu


def _round_up(v, m):
    return ((v + m - 1) // m) * m


def _tpu_hints():
    """Best-effort (num_tensorcores, per-step block-byte target)."""
    kind = ""
    try:
        kind = jax.devices()[0].device_kind.lower()
    except Exception:
        pass
    num_cores = 2 if "v7" in kind else 1
    try:  # prefer an authoritative core count if the runtime exposes one
        info = pltpu.get_tpu_info()
        for attr in ("num_cores", "core_count", "num_tensorcores", "tensorcore_count"):
            v = getattr(info, attr, None)
            if isinstance(v, int) and 0 < v <= 8:
                num_cores = v
                break
    except Exception:
        pass
    if "v7" in kind:
        blk = 6 << 20   # 3.2 TB/s HBM -> the 0.35us/step overhead dominates small tiles
    elif "v5" in kind:
        blk = 3 << 20   # keep 4x double-buffers comfortable on v5e
    else:
        blk = 4 << 20   # v6e & default
    return num_cores, blk


def _pick_pack_factor(Cg, HW, itemsize):
    """Factor F so (Cg, HW) -> (Cg*F, HW//F) is sublane-dense for small Cg."""
    sub_tile = 8 * max(1, 4 // itemsize)   # f32: 8, bf16: 16, int8/fp8: 32
    if Cg >= sub_tile:
        return 1
    target = -(-sub_tile // Cg)            # ceil
    divisors = sorted(d for d in range(1, HW + 1) if HW % d == 0)
    for d in divisors:                     # best: fully lane-dense (128-multiple) stores
        if d >= target and (HW // d) % 128 == 0:
            return d
    for d in divisors:                     # next: at least one full lane register
        if d >= target and (HW // d) >= 128:
            return d
    for d in divisors:                     # last resort: dense sublanes, shorter lanes
        if d >= target and (HW // d) >= 8:
            return d
    return 1


def _groupnorm_kernel(x_ref, w_ref, b_ref, o_ref, *, eps, inv_n, inv_nm1):
    # x_ref: (rn, rg, CgF, HWF)    w_ref / b_ref: (1, rg, CgF, 1)
    x = x_ref[...]

    # Two-pass statistics with fp32 accumulation (matches the two-pass reference
    # and avoids sumsq cancellation when |mean| >> std).  Each f32 cast feeds a
    # single reduction chain, so no full fp32 copy of a sub-32-bit block is kept.
    s = jnp.sum(x.astype(jnp.float32), axis=-1, keepdims=True)   # lane reduce (XLU)
    s = jnp.sum(s, axis=-2, keepdims=True)                       # sublane reduce
    mean = s * inv_n                                             # (rn, rg, 1, 1)

    d = x.astype(jnp.float32) - mean
    sq = jnp.sum(jnp.square(d), axis=-1, keepdims=True)
    sq = jnp.sum(sq, axis=-2, keepdims=True)
    var = sq * inv_nm1                 # unbiased /(n-1): torch .var() default parity
    inv_std = lax.rsqrt(var + eps)     # EUP

    w = w_ref[...].astype(jnp.float32)                           # (1, rg, CgF, 1)
    b = b_ref[...].astype(jnp.float32)
    scale = inv_std * w                                          # (rn, rg, CgF, 1)
    shift = b - mean * scale

    if jnp.dtype(x.dtype) == jnp.dtype(jnp.float32):
        o_ref[...] = (x * scale + shift).astype(o_ref.dtype)
    else:
        # Sub-32-bit inputs: apply the affine in the input dtype (bf16 VPU on
        # v6e/v7x); scale/shift were derived in fp32 so accuracy is preserved.
        o_ref[...] = (x * scale.astype(x.dtype) + shift.astype(x.dtype)).astype(o_ref.dtype)


def group_norm(x, weight, bias, *, num_groups, eps=1e-5, target_block_bytes=None):
    """GroupNorm forward.

    x:      (N, C, H, W)
    weight: (1, C, 1, 1)
    bias:   (1, C, 1, 1)
    """
    N, C, H, W = x.shape
    G = num_groups
    assert C % G == 0, "C must be divisible by num_groups"
    Cg = C // G
    HW = H * W
    n = Cg * HW
    itemsize = jnp.dtype(x.dtype).itemsize

    num_cores, default_blk = _tpu_hints()
    if target_block_bytes is None:
        target_block_bytes = default_blk

    # Sublane-dense packing: (Cg, HW) -> (Cg*F, HW//F) preserves flat order, so
    # per-group statistics are unchanged; the per-channel affine becomes a
    # per-packed-row broadcast after jnp.repeat on weight/bias.
    F = _pick_pack_factor(Cg, HW, itemsize)
    CgF, HWF = Cg * F, HW // F

    x4 = x.reshape(N, G, CgF, HWF)                 # contiguous -> free reshape
    w4 = jnp.repeat(jnp.reshape(weight, (1, G, Cg, 1)), F, axis=2)
    b4 = jnp.repeat(jnp.reshape(bias, (1, G, Cg, 1)), F, axis=2)

    # Padded (layout-tiled) footprint of one (batch, group) plane -> VMEM-true sizing.
    sub_tile = 8 * max(1, 4 // itemsize)
    group_bytes = _round_up(CgF, sub_tile) * _round_up(HWF, 128) * itemsize
    row_bytes = G * group_bytes

    if row_bytes <= target_block_bytes:
        rg = G
        rn = max(1, min(N, target_block_bytes // row_bytes))
    else:
        rn = 1
        rg = max(1, min(G, target_block_bytes // group_bytes))
        # TODO(synk): if a single padded (CgF, HWF) group slab still exceeds the
        # budget, split HW with an inner "arbitrary" grid axis (accumulate
        # sum/sumsq into VMEM scratch, finalize via pl.when) instead of one big block.

    # Keep >= num_cores grid steps so v7x's two TensorCores both get work; on
    # single-TC v5e/v6e nothing is shrunk (full block budget, fewest steps).
    if num_cores > 1:
        while pl.cdiv(G, rg) * pl.cdiv(N, rn) < num_cores and (rn > 1 or rg > 1):
            if rn > 1:
                rn = pl.cdiv(rn, 2)   # split batch first: keeps weight/bias DMA reuse
            else:
                rg = pl.cdiv(rg, 2)

    # Group axis is the OUTER grid axis so the weight/bias block index is
    # constant across the inner N loop and the pipeline skips re-DMAing them.
    grid = (pl.cdiv(G, rg), pl.cdiv(N, rn))

    # 2x(in) + 2x(out) double buffers + small w/b + headroom; keep under v7x's
    # 64 MiB physical VMEM and above the tightest scoped default we might need.
    block_bytes = rn * rg * group_bytes
    vmem_limit = int(min(56 << 20, max(24 << 20, 4 * block_bytes + (4 << 20))))

    kernel = functools.partial(
        _groupnorm_kernel,
        eps=float(eps),
        inv_n=1.0 / n,
        inv_nm1=(1.0 / (n - 1)) if n > 1 else float("nan"),  # torch .var() parity for n==1
    )

    out4 = pl.pallas_call(
        kernel,
        out_shape=jax.ShapeDtypeStruct((N, G, CgF, HWF), x.dtype),
        grid_spec=pltpu.PrefetchScalarGridSpec(
            num_scalar_prefetch=0,
            grid=grid,
            in_specs=[
                pl.BlockSpec((rn, rg, CgF, HWF), lambda g, i: (i, g, 0, 0)),
                pl.BlockSpec((1, rg, CgF, 1), lambda g, i: (0, g, 0, 0)),
                pl.BlockSpec((1, rg, CgF, 1), lambda g, i: (0, g, 0, 0)),
            ],
            out_specs=pl.BlockSpec((rn, rg, CgF, HWF), lambda g, i: (i, g, 0, 0)),
        ),
        compiler_params=pltpu.CompilerParams(
            dimension_semantics=("parallel", "parallel"),
            vmem_limit_bytes=vmem_limit,
        ),
    )(x4, w4, b4)

    return out4.reshape(N, C, H, W)


def group_norm_ref(x, weight, bias, *, num_groups, eps=1e-5):
    """Pure-JAX reference matching the PyTorch (hawtorch) module."""
    N, C, H, W = x.shape
    G = num_groups
    xr = x.reshape(N, G, -1).astype(jnp.float32)
    mean = xr.mean(-1, keepdims=True)
    var = xr.var(-1, keepdims=True, ddof=1)  # unbiased, like torch .var() default
    xr = (xr - mean) / jnp.sqrt(var + eps)
    xr = xr.reshape(N, C, H, W)
    return (xr * weight + bias).astype(x.dtype)


if __name__ == "__main__":
    kx, kw, kb = jax.random.split(jax.random.PRNGKey(0), 3)

    # Small shapes consistent with the module (C divisible by num_groups).
    N, C, H, W = 2, 4, 16, 16
    num_groups = 2
    eps = 1e-5

    x = jax.random.normal(kx, (N, C, H, W), dtype=jnp.float32)
    # Deterministic, non-trivial affine params (shape matches nn.Parameter(1,C,1,1)).
    weight = 1.0 + 0.1 * jax.random.normal(kw, (1, C, 1, 1), dtype=jnp.float32)
    bias = 0.1 * jax.random.normal(kb, (1, C, 1, 1), dtype=jnp.float32)

    out = group_norm(x, weight, bias, num_groups=num_groups, eps=eps)
    out = jax.block_until_ready(out)

    ref = group_norm_ref(x, weight, bias, num_groups=num_groups, eps=eps)
    assert out.shape == (N, C, H, W)
    assert jnp.allclose(out, ref, atol=1e-4, rtol=1e-4), "mismatch vs reference"

    print("KERNEL_OK")
</pallas_src>

<mosaic_0001>
module attributes {stable_mosaic.version = 11 : i64} {
  func.func @_groupnorm_kernel(%arg0: i32, %arg1: i32, %arg2: memref<2x2x8x64xf32, #tpu.memory_space<vmem>>, %arg3: memref<1x2x8x1xf32, #tpu.memory_space<vmem>>, %arg4: memref<1x2x8x1xf32, #tpu.memory_space<vmem>>, %arg5: memref<2x2x8x64xf32, #tpu.memory_space<vmem>>) attributes {dimension_semantics = [#tpu.dimension_semantics<parallel>, #tpu.dimension_semantics<parallel>], iteration_bounds = array<i64: 1, 1>, scalar_prefetch = 0 : i64, scratch_operands = 0 : i64, tpu.core_type = #tpu.core_type<tc>, window_params = [{transform_indices = @transform_0, window_bounds = array<i64: 2, 2, 8, 64>}, {transform_indices = @transform_1, window_bounds = array<i64: 1, 2, 8, 1>}, {transform_indices = @transform_2, window_bounds = array<i64: 1, 2, 8, 1>}, {transform_indices = @transform_3, window_bounds = array<i64: 2, 2, 8, 64>}]} {
    %c0 = arith.constant 0 : index
    %c0_0 = arith.constant 0 : index
    %c0_1 = arith.constant 0 : index
    %c0_2 = arith.constant 0 : index
    %0 = vector.load %arg2[%c0, %c0_0, %c0_1, %c0_2] : memref<2x2x8x64xf32, #tpu.memory_space<vmem>>, vector<2x2x8x64xf32>
    %cst = arith.constant dense<0.000000e+00> : vector<2x2x8xf32>
    %1 = vector.multi_reduction <add>, %0, %cst [3] : vector<2x2x8x64xf32> to vector<2x2x8xf32>
    %2 = vector.shape_cast %1 : vector<2x2x8xf32> to vector<2x2x8x1xf32>
    %cst_3 = arith.constant dense<0.000000e+00> : vector<2x2x1xf32>
    %3 = vector.multi_reduction <add>, %2, %cst_3 [2] : vector<2x2x8x1xf32> to vector<2x2x1xf32>
    %4 = vector.shape_cast %3 : vector<2x2x1xf32> to vector<2x2x1x1xf32>
    %cst_4 = arith.constant 0.001953125 : f32
    %5 = vector.broadcast %cst_4 : f32 to vector<2x2x1x1xf32>
    %6 = arith.mulf %4, %5 : vector<2x2x1x1xf32>
    %7 = vector.broadcast %6 : vector<2x2x1x1xf32> to vector<2x2x8x64xf32>
    %8 = arith.subf %0, %7 : vector<2x2x8x64xf32>
    %9 = arith.mulf %8, %8 : vector<2x2x8x64xf32>
    %cst_5 = arith.constant dense<0.000000e+00> : vector<2x2x8xf32>
    %10 = vector.multi_reduction <add>, %9, %cst_5 [3] : vector<2x2x8x64xf32> to vector<2x2x8xf32>
    %11 = vector.shape_cast %10 : vector<2x2x8xf32> to vector<2x2x8x1xf32>
    %cst_6 = arith.constant dense<0.000000e+00> : vector<2x2x1xf32>
    %12 = vector.multi_reduction <add>, %11, %cst_6 [2] : vector<2x2x8x1xf32> to vector<2x2x1xf32>
    %13 = vector.shape_cast %12 : vector<2x2x1xf32> to vector<2x2x1x1xf32>
    %cst_7 = arith.constant 0.00195694715 : f32
    %14 = vector.broadcast %cst_7 : f32 to vector<2x2x1x1xf32>
    %15 = arith.mulf %13, %14 : vector<2x2x1x1xf32>
    %cst_8 = arith.constant 9.99999974E-6 : f32
    %16 = vector.broadcast %cst_8 : f32 to vector<2x2x1x1xf32>
    %17 = arith.addf %15, %16 : vector<2x2x1x1xf32>
    %18 = math.rsqrt %17 : vector<2x2x1x1xf32>
    %c0_9 = arith.constant 0 : index
    %c0_10 = arith.constant 0 : index
    %c0_11 = arith.constant 0 : index
    %c0_12 = arith.constant 0 : index
    %19 = vector.load %arg3[%c0_9, %c0_10, %c0_11, %c0_12] : memref<1x2x8x1xf32, #tpu.memory_space<vmem>>, vector<1x2x8x1xf32>
    %c0_13 = arith.constant 0 : index
    %c0_14 = arith.constant 0 : index
    %c0_15 = arith.constant 0 : index
    %c0_16 = arith.constant 0 : index
    %20 = vector.load %arg4[%c0_13, %c0_14, %c0_15, %c0_16] : memref<1x2x8x1xf32, #tpu.memory_space<vmem>>, vector<1x2x8x1xf32>
    %21 = vector.broadcast %18 : vector<2x2x1x1xf32> to vector<2x2x8x1xf32>
    %22 = vector.broadcast %19 : vector<1x2x8x1xf32> to vector<2x2x8x1xf32>
    %23 = arith.mulf %21, %22 : vector<2x2x8x1xf32>
    %24 = vector.broadcast %6 : vector<2x2x1x1xf32> to vector<2x2x8x1xf32>
    %25 = arith.mulf %24, %23 : vector<2x2x8x1xf32>
    %26 = vector.broadcast %20 : vector<1x2x8x1xf32> to vector<2x2x8x1xf32>
    %27 = arith.subf %26, %25 : vector<2x2x8x1xf32>
    %28 = vector.broadcast %23 : vector<2x2x8x1xf32> to vector<2x2x8x64xf32>
    %29 = arith.mulf %0, %28 : vector<2x2x8x64xf32>
    %30 = vector.broadcast %27 : vector<2x2x8x1xf32> to vector<2x2x8x64xf32>
    %31 = arith.addf %29, %30 : vector<2x2x8x64xf32>
    %c0_17 = arith.constant 0 : index
    %c0_18 = arith.constant 0 : index
    %c0_19 = arith.constant 0 : index
    %c0_20 = arith.constant 0 : index
    %32 = vector.load %arg5[%c0_17, %c0_18, %c0_19, %c0_20] : memref<2x2x8x64xf32, #tpu.memory_space<vmem>>, vector<2x2x8x64xf32>
    tpu.vector_store %arg5[%c0_17, %c0_18, %c0_19, %c0_20], %31 {strides = array<i32>} : memref<2x2x8x64xf32, #tpu.memory_space<vmem>>, vector<2x2x8x64xf32>,
    return
  }
  func.func @transform_0(%arg0: i32, %arg1: i32) -> (i32, i32, i32, i32) {
    %c0_i32 = arith.constant 0 : i32
    %c0_i32_0 = arith.constant 0 : i32
    %c0_i32_1 = arith.constant 0 : i32
    return %arg1, %arg0, %c0_i32, %c0_i32_0 : i32, i32, i32, i32
  }
  func.func @transform_1(%arg0: i32, %arg1: i32) -> (i32, i32, i32, i32) {
    %c0_i32 = arith.constant 0 : i32
    %c0_i32_0 = arith.constant 0 : i32
    %c0_i32_1 = arith.constant 0 : i32
    %c0_i32_2 = arith.constant 0 : i32
    return %c0_i32, %arg0, %c0_i32_0, %c0_i32_1 : i32, i32, i32, i32
  }
  func.func @transform_2(%arg0: i32, %arg1: i32) -> (i32, i32, i32, i32) {
    %c0_i32 = arith.constant 0 : i32
    %c0_i32_0 = arith.constant 0 : i32
    %c0_i32_1 = arith.constant 0 : i32
    %c0_i32_2 = arith.constant 0 : i32
    return %c0_i32, %arg0, %c0_i32_0, %c0_i32_1 : i32, i32, i32, i32
  }
  func.func @transform_3(%arg0: i32, %arg1: i32) -> (i32, i32, i32, i32) {
    %c0_i32 = arith.constant 0 : i32
    %c0_i32_0 = arith.constant 0 : i32
    %c0_i32_1 = arith.constant 0 : i32
    return %arg1, %arg0, %c0_i32, %c0_i32_0 : i32, i32, i32, i32
  }
}

</mosaic_0001>

<llo_original>
// kernel: tpu_custom_call.1
$region0: #{tpu_custom_call.1}
  #allocation0 [shape = 'u32[]', space=smem, size = 0x4, offset = 0x4, fixed_abs, tag = 'smem constant byte address 0x4 - core index']
  #allocation1 [shape = 'u32[144,128]{1,0:T(1,128)}', space=vmem, size = 0x12000, scoped, tag = 'internal scratch']
  %s0 = inlined_call_operand.vmem [shape: f32[2,2,8,64], index: 0, kind: input, shape index: {}]
  %s1 = inlined_call_operand.vmem [shape: f32[1,2,8,1], index: 1, kind: input, shape index: {}]
  %s2 = inlined_call_operand.vmem [shape: f32[1,2,8,1], index: 2, kind: input, shape index: {}]
  %s3 = inlined_call_operand.hbm [shape: f32[2,2,8,64], index: 3, kind: output, shape index: {}]
  %s4 = sld [smem:[#allocation0]]
  $region22: #{tpu_custom_call.1} parent=0
    _
  %s6 = ssub.s32 1, %s4
  %s7 = scalar_select 0, %s6, %s4
  $region1: #{tpu_custom_call.1} parent=0
    #allocation2 [shape = 'u8[16384]{0}', space=vmem, size = 0x4000, scoped, tag = 'output window, operand 0, single buffered']
    #allocation3 [shape = 's32[1]{0}', space=sflag, size = 0x4, scoped, tag = 'scoped memory for tpu_custom_call.1']
    %8 = vsyncpa [#allocation3], 0
    // Predicated region
    $region2: #{tpu_custom_call.1} parent=1 // pred_check
      _
    $region3: #{tpu_custom_call.1} parent=1 // pred_check_branch
      %10 = sbr.rel (0) target = $region5
    $region4: #{tpu_custom_call.1} parent=1 // pred_region
      _
    $region5: #{tpu_custom_call.1} parent=1 // pred_fallthru
      _
    // Predicated region
    $region6: #{tpu_custom_call.1} parent=1 // pred_check
      _
    $region7: #{tpu_custom_call.1} parent=1 // pred_check_branch
      %12 = sbr.rel (0) target = $region9
    $region8: #{tpu_custom_call.1} parent=1 // pred_region
      _
    $region9: #{tpu_custom_call.1} parent=1 // pred_fallthru
      _
    // Predicated region
    $region10: #{tpu_custom_call.1} parent=1 // pred_check
      _
    $region11: #{tpu_custom_call.1} parent=1 // pred_check_branch
      %14 = sbr.rel (0) target = $region13
    $region12: #{tpu_custom_call.1} parent=1 // pred_region
      _
    $region13: #{tpu_custom_call.1} parent=1 // pred_fallthru
      _
    %v15 = vld [vmem:[%s0] sm:$0xff]
    %v16 = vld [vmem:[%s0 + $0x8] sm:$0xff]
    %v17 = vld [vmem:[%s0 + $0x10] sm:$0xff]
    %v18 = vld [vmem:[%s0 + $0x18] sm:$0xff]
    %vm19 = vcmask 523264
    %v20 = vsel %vm19, %v15, 0.0
    %21 = vadd.xlane.f32.xlu0 %v20
    %v22 = vpop.xlane.xlu0 %21
    %v23 = vsel %vm19, %v16, 0.0
    %24 = vadd.xlane.f32.xlu0 %v23
    %v25 = vpop.xlane.xlu0 %24
    %v26 = vsel %vm19, %v17, 0.0
    %27 = vadd.xlane.f32.xlu0 %v26
    %v28 = vpop.xlane.xlu0 %27
    %v29 = vsel %vm19, %v18, 0.0
    %30 = vadd.xlane.f32.xlu0 %v29
    %v31 = vpop.xlane.xlu0 %30
    %v32 = vrot.slane %v22, 4
    %v33 = vadd.f32 %v22, %v32
    %v34 = vrot.slane %v33, 2
    %v35 = vadd.f32 %v33, %v34
    %v36 = vrot.slane %v35, 1
    %v37 = vadd.f32 %v35, %v36
    %v38 = vrot.slane %v25, 4
    %v39 = vadd.f32 %v25, %v38
    %v40 = vrot.slane %v39, 2
    %v41 = vadd.f32 %v39, %v40
    %v42 = vrot.slane %v41, 1
    %v43 = vadd.f32 %v41, %v42
    %v44 = vrot.slane %v28, 4
    %v45 = vadd.f32 %v28, %v44
    %v46 = vrot.slane %v45, 2
    %v47 = vadd.f32 %v45, %v46
    %v48 = vrot.slane %v47, 1
    %v49 = vadd.f32 %v47, %v48
    %v50 = vrot.slane %v31, 4
    %v51 = vadd.f32 %v31, %v50
    %v52 = vrot.slane %v51, 2
    %v53 = vadd.f32 %v51, %v52
    %v54 = vrot.slane %v53, 1
    %v55 = vadd.f32 %v53, %v54
    %v56 = vmul.f32 %v37, 0.001953125
    %v57 = vmul.f32 %v43, 0.001953125
    %v58 = vmul.f32 %v49, 0.001953125
    %v59 = vmul.f32 %v55, 0.001953125
    %v60 = vsub.f32 %v15, %v56
    %v61 = vsub.f32 %v16, %v57
    %v62 = vsub.f32 %v17, %v58
    %v63 = vsub.f32 %v18, %v59
    %v64 = vmul.f32 %v60, %v60
    %v65 = vmul.f32 %v61, %v61
    %v66 = vmul.f32 %v62, %v62
    %v67 = vmul.f32 %v63, %v63
    %v68 = vsel %vm19, %v64, 0.0
    %69 = vadd.xlane.f32.xlu0 %v68
    %v70 = vpop.xlane.xlu0 %69
    %v71 = vsel %vm19, %v65, 0.0
    %72 = vadd.xlane.f32.xlu0 %v71
    %v73 = vpop.xlane.xlu0 %72
    %v74 = vsel %vm19, %v66, 0.0
    %75 = vadd.xlane.f32.xlu0 %v74
    %v76 = vpop.xlane.xlu0 %75
    %v77 = vsel %vm19, %v67, 0.0
    %78 = vadd.xlane.f32.xlu0 %v77
    %v79 = vpop.xlane.xlu0 %78
    %v80 = vrot.slane %v70, 4
    %v81 = vadd.f32 %v70, %v80
    %v82 = vrot.slane %v81, 2
    %v83 = vadd.f32 %v81, %v82
    %v84 = vrot.slane %v83, 1
    %v85 = vadd.f32 %v83, %v84
    %v86 = vrot.slane %v73, 4
    %v87 = vadd.f32 %v73, %v86
    %v88 = vrot.slane %v87, 2
    %v89 = vadd.f32 %v87, %v88
    %v90 = vrot.slane %v89, 1
    %v91 = vadd.f32 %v89, %v90
    %v92 = vrot.slane %v76, 4
    %v93 = vadd.f32 %v76, %v92
    %v94 = vrot.slane %v93, 2
    %v95 = vadd.f32 %v93, %v94
    %v96 = vrot.slane %v95, 1
    %v97 = vadd.f32 %v95, %v96
    %v98 = vrot.slane %v79, 4
    %v99 = vadd.f32 %v79, %v98
    %v100 = vrot.slane %v99, 2
    %v101 = vadd.f32 %v99, %v100
    %v102 = vrot.slane %v101, 1
    %v103 = vadd.f32 %v101, %v102
    %v104 = vmul.f32 %v85, 0.0019569471
    %v105 = vmul.f32 %v91, 0.0019569471
    %v106 = vmul.f32 %v97, 0.0019569471
    %v107 = vmul.f32 %v103, 0.0019569471
    %v108 = vadd.f32 %v104, 1e-05
    %v109 = vadd.f32 %v105, 1e-05
    %v110 = vadd.f32 %v106, 1e-05
    %v111 = vadd.f32 %v107, 1e-05
    %v112 = vrsqrt.pop %v108
    %v113 = vrsqrt.pop %v109
    %v114 = vrsqrt.pop %v110
    %v115 = vrsqrt.pop %v111
    %v116 = vld [vmem:[%s1] sm:$0xff]
    %v117 = vld [vmem:[%s1 + $0x8] sm:$0xff]
    %v118 = vld [vmem:[%s2] sm:$0xff]
    %v119 = vld [vmem:[%s2 + $0x8] sm:$0xff]
    %v120 = vmul.f32 %v112, %v116
    %v121 = vmul.f32 %v113, %v117
    %v122 = vmul.f32 %v114, %v116
    %v123 = vmul.f32 %v115, %v117
    %v124 = vmul.f32 %v56, %v120
    %v125 = vmul.f32 %v57, %v121
    %v126 = vmul.f32 %v58, %v122
    %v127 = vmul.f32 %v59, %v123
    %v128 = vsub.f32 %v118, %v124
    %v129 = vsub.f32 %v119, %v125
    %v130 = vsub.f32 %v118, %v126
    %v131 = vsub.f32 %v119, %v127
    %133 = vset.pattern.permute.xlu0 0
    %134 = vperm.xlu0 %133, %v120
    %v135 = vpop.permute.xlu0 %134
    %138 = vset.pattern.permute.xlu0 0
    %139 = vperm.xlu0 %138, %v121
    %v140 = vpop.permute.xlu0 %139
    %143 = vset.pattern.permute.xlu0 0
    %144 = vperm.xlu0 %143, %v122
    %v145 = vpop.permute.xlu0 %144
    %148 = vset.pattern.permute.xlu0 0
    %149 = vperm.xlu0 %148, %v123
    %v150 = vpop.permute.xlu0 %149
    %v152 = vmul.f32 %v15, %v135
    %v153 = vmul.f32 %v16, %v140
    %v154 = vmul.f32 %v17, %v145
    %v155 = vmul.f32 %v18, %v150
    %157 = vset.pattern.permute.xlu0 0
    %158 = vperm.xlu0 %157, %v128
    %v159 = vpop.permute.xlu0 %158
    %162 = vset.pattern.permute.xlu0 0
    %163 = vperm.xlu0 %162, %v129
    %v164 = vpop.permute.xlu0 %163
    %167 = vset.pattern.permute.xlu0 0
    %168 = vperm.xlu0 %167, %v130
    %v169 = vpop.permute.xlu0 %168
    %172 = vset.pattern.permute.xlu0 0
    %173 = vperm.xlu0 %172, %v131
    %v174 = vpop.permute.xlu0 %173
    %v176 = vadd.f32 %v152, %v159
    %v177 = vadd.f32 %v153, %v164
    %v178 = vadd.f32 %v154, %v169
    %v179 = vadd.f32 %v155, %v174
    %180 = vst.msk [vmem:[#allocation2] sm:$0xff] %vm19, %v176
    %181 = vst.msk [vmem:[#allocation2 + $0x8] sm:$0xff] %vm19, %v177
    %182 = vst.msk [vmem:[#allocation2 + $0x10] sm:$0xff] %vm19, %v178
    %183 = vst.msk [vmem:[#allocation2 + $0x18] sm:$0xff] %vm19, %v179
    // Predicated region
    $region14: #{tpu_custom_call.1} parent=1 // pred_check
      _
    $region15: #{tpu_custom_call.1} parent=1 // pred_check_branch
      %185 = sbr.rel (0) target = $region17
    $region16: #{tpu_custom_call.1} parent=1 // pred_region
      %s187 = ssub.s32 512, 512
      %188 = vsyncadd [#allocation3], %s187
      %s189 = sshll.u32 [#allocation2], 4
      %s190 = int_to_ptr.vmem [resolvable:$true] %s189
      %195 = dma.vmem_to_hbm [thread:$0]  %s190, 512, %s3, [#allocation3], 128, 128, 8
    $region17: #{tpu_custom_call.1} parent=1 // pred_fallthru
      _
    // Predicated region
    $region18: #{tpu_custom_call.1} parent=1 // pred_check
      _
    $region19: #{tpu_custom_call.1} parent=1 // pred_check_branch
      %197 = sbr.rel (0) target = $region21
    $region20: #{tpu_custom_call.1} parent=1 // pred_region
      %198 = dma.done [#allocation3], 512
    $region21: #{tpu_custom_call.1} parent=1 // pred_fallthru
      _
    %199 = vsyncpa [#allocation3], 1

</llo_original>
